<compile_context>
chip_gen: v7x
topology: tpu7x:2x2x1
jax: 0.10.0
libtpu: 0.0.40
codegen_flags: <defaults>
</compile_context>

<pallas_src>
import functools

import jax
import jax.numpy as jnp
from jax.experimental import pallas as pl
from jax.experimental.pallas import tpu as pltpu

EPS = 1e-5
LANE = 128


def _vmem_limit_bytes():
    """~75% of physical VMEM (128 MiB on v5e/v6e, 64 MiB on v7x)."""
    cap = 64 * 1024 * 1024  # conservative fallback (v7x)
    try:
        info = pltpu.get_tpu_info()
        cap = int(getattr(info, "vmem_capacity_bytes", cap))
    except Exception:
        pass
    return max(32 * 1024 * 1024, (cap * 3) // 4)


def _choose_tiles(B, F, T, itemsize, vmem_limit, t_block_max=2048):
    """Pick (B_blk, t_blk) so one x tile is multi-MiB while the double-buffered
    working set of either pass stays well inside `vmem_limit`."""
    tile_budget = max(1 << 20, vmem_limit // 8)

    if T <= LANE:
        t_blk = T                                   # full dim: no lane constraint
    else:
        t_blk = min(t_block_max, pl.cdiv(T, LANE) * LANE)   # multiple of 128
        while t_blk > LANE and F * t_blk * itemsize > tile_budget:
            t_blk = max(LANE, ((t_blk // 2) + LANE - 1) // LANE * LANE)

    b_blk = max(1, min(B, tile_budget // max(1, F * t_blk * itemsize)))
    return b_blk, t_blk


def _stats_kernel(x_ref, psum_ref, pssq_ref, acc_s, acc_q, *,
                  b_blk, t_blk, true_b, true_t):
    """Per-B-block, per-channel sum / sum-of-squares over T tiles.

    Lane-resident partials accumulate in VMEM scratch; the cross-lane reduce
    runs once per B block on the last T tile.  Ragged B/T tails are masked
    (statically compiled out when the shapes divide the blocks)."""
    bi = pl.program_id(0)
    ti = pl.program_id(1)

    @pl.when(ti == 0)
    def _():
        acc_s[...] = jnp.zeros_like(acc_s)
        acc_q[...] = jnp.zeros_like(acc_q)

    x = x_ref[...].astype(jnp.float32)              # (b_blk, F, t_blk)

    need_b_mask = (true_b % b_blk) != 0
    need_t_mask = (true_t % t_blk) != 0
    if need_b_mask and need_t_mask:
        b_ids = jax.lax.broadcasted_iota(jnp.int32, x.shape, 0) + bi * b_blk
        t_ids = jax.lax.broadcasted_iota(jnp.int32, x.shape, 2) + ti * t_blk
        x = jnp.where((b_ids < true_b) & (t_ids < true_t), x, 0.0)
    elif need_b_mask:
        b_ids = jax.lax.broadcasted_iota(jnp.int32, x.shape, 0) + bi * b_blk
        x = jnp.where(b_ids < true_b, x, 0.0)
    elif need_t_mask:
        t_ids = jax.lax.broadcasted_iota(jnp.int32, x.shape, 2) + ti * t_blk
        x = jnp.where(t_ids < true_t, x, 0.0)

    acc_s[...] += jnp.sum(x, axis=0)                # (F, t_blk)
    acc_q[...] += jnp.sum(x * x, axis=0)            # (F, t_blk)

    @pl.when(ti == pl.num_programs(1) - 1)
    def _():
        psum_ref[...] = jnp.sum(acc_s[...], axis=1, keepdims=True)[None]   # (1,F,1)
        pssq_ref[...] = jnp.sum(acc_q[...], axis=1, keepdims=True)[None]   # (1,F,1)


def _apply_kernel(x_ref, scale_ref, shift_ref, o_ref):
    """out = x * scale + shift  (BN + conditional affine folded into scale/shift)."""
    x = x_ref[...].astype(jnp.float32)              # (b_blk, F, t_blk)
    o_ref[...] = (x * scale_ref[...] + shift_ref[...]).astype(o_ref.dtype)


def cbatchnorm(x, c, w_gamma, b_gamma, w_beta, b_beta, *, t_block_max=2048):
    """Conditional batch norm forward (training-mode batch statistics).

    x : (B, F, T) activations (f32 or bf16; output keeps x's dtype)
    c : (B, L)    latent code
    w_*: (F, L)   1x1 Conv1d weights (kernel dim squeezed)
    b_*: (F,)     1x1 Conv1d biases
    """
    B, F, T = x.shape
    out_dtype = x.dtype
    itemsize = jnp.dtype(x.dtype).itemsize

    vmem_limit = _vmem_limit_bytes()
    b_blk, t_blk = _choose_tiles(B, F, T, itemsize, vmem_limit, t_block_max)
    num_b = pl.cdiv(B, b_blk)
    num_t = pl.cdiv(T, t_blk)

    # ---- pass 1: per-B-block, per-channel sum / sum-of-squares over T tiles.
    stats_kernel = functools.partial(
        _stats_kernel, b_blk=b_blk, t_blk=t_blk, true_b=B, true_t=T)

    psum, pssq = pl.pallas_call(
        stats_kernel,
        out_shape=(jax.ShapeDtypeStruct((num_b, F, 1), jnp.float32),
                   jax.ShapeDtypeStruct((num_b, F, 1), jnp.float32)),
        grid_spec=pltpu.PrefetchScalarGridSpec(
            num_scalar_prefetch=0,
            grid=(num_b, num_t),
            in_specs=[pl.BlockSpec((b_blk, F, t_blk), lambda b, t: (b, 0, t))],
            out_specs=(pl.BlockSpec((1, F, 1), lambda b, t: (b, 0, 0)),
                       pl.BlockSpec((1, F, 1), lambda b, t: (b, 0, 0))),
            scratch_shapes=[pltpu.VMEM((F, t_blk), jnp.float32),
                            pltpu.VMEM((F, t_blk), jnp.float32)],
        ),
        compiler_params=pltpu.CompilerParams(
            dimension_semantics=("parallel", "arbitrary"),
            vmem_limit_bytes=vmem_limit,
        ),
    )(x)

    # ---- finalize stats + tiny 1x1 conv on the latent in plain XLA (K = L is
    #      tiny; it badly underfills the MXU, so it stays out of the hot path).
    n = jnp.float32(B * T)                       # true count: masked tails excluded
    s = jnp.sum(psum[:, :, 0], axis=0)           # (F,)  cross-B-block reduce
    q = jnp.sum(pssq[:, :, 0], axis=0)           # (F,)
    mean = s / n
    var = jnp.maximum(q / n - mean * mean, 0.0)  # clamp: f32 cancellation safety
    inv_std = jax.lax.rsqrt(var + EPS)

    cf = c.astype(jnp.float32)
    gamma = jnp.dot(cf, w_gamma.astype(jnp.float32).T) + b_gamma.astype(jnp.float32)
    beta = jnp.dot(cf, w_beta.astype(jnp.float32).T) + b_beta.astype(jnp.float32)

    # Fold BN + conditional affine into one per-(sample, channel) scale/shift.
    scale2d = gamma * inv_std[None, :]            # (B, F)
    shift2d = beta - mean[None, :] * scale2d      # (B, F)
    scale = scale2d[:, :, None]                   # (B, F, 1)
    shift = shift2d[:, :, None]

    # ---- pass 2: elementwise scale/shift, tiled over (B, T); both axes parallel.
    out = pl.pallas_call(
        _apply_kernel,
        out_shape=jax.ShapeDtypeStruct((B, F, T), out_dtype),
        grid_spec=pltpu.PrefetchScalarGridSpec(
            num_scalar_prefetch=0,
            grid=(num_b, num_t),
            in_specs=[
                pl.BlockSpec((b_blk, F, t_blk), lambda b, t: (b, 0, t)),
                pl.BlockSpec((b_blk, F, 1), lambda b, t: (b, 0, 0)),
                pl.BlockSpec((b_blk, F, 1), lambda b, t: (b, 0, 0)),
            ],
            out_specs=pl.BlockSpec((b_blk, F, t_blk), lambda b, t: (b, 0, t)),
        ),
        compiler_params=pltpu.CompilerParams(
            dimension_semantics=("parallel", "parallel"),
            vmem_limit_bytes=vmem_limit,
        ),
    )(x, scale, shift)

    return out


def _reference(x, c, wg, bg, wb, bb):
    mean = jnp.mean(x, axis=(0, 2), keepdims=True)
    var = jnp.mean((x - mean) ** 2, axis=(0, 2), keepdims=True)
    net = (x - mean) / jnp.sqrt(var + EPS)
    gamma = c @ wg.T + bg
    beta = c @ wb.T + bb
    return gamma[:, :, None] * net + beta[:, :, None]


if __name__ == "__main__":
    B, L, F, T = 2, 8, 32, 16     # batch, latent_dim, feature_dim, seq length

    key = jax.random.PRNGKey(0)
    kx, kc, kwg, kwb = jax.random.split(key, 4)

    x = jax.random.normal(kx, (B, F, T), dtype=jnp.float32)
    c = jax.random.normal(kc, (B, L), dtype=jnp.float32)

    # Conv1d(L, F, 1) weights squeezed to (F, L).  reset_parameters() would set
    # w_* = 0, b_gamma = 1, b_beta = 0; small random weights keep the
    # conditional path non-trivial.
    w_gamma = 0.1 * jax.random.normal(kwg, (F, L), dtype=jnp.float32)
    w_beta = 0.1 * jax.random.normal(kwb, (F, L), dtype=jnp.float32)
    b_gamma = jnp.ones((F,), dtype=jnp.float32)
    b_beta = jnp.zeros((F,), dtype=jnp.float32)

    out = cbatchnorm(x, c, w_gamma, b_gamma, w_beta, b_beta)
    out = jax.block_until_ready(out)

    ref = _reference(x, c, w_gamma, b_gamma, w_beta, b_beta)
    assert out.shape == (B, F, T)
    assert out.dtype == x.dtype
    assert jnp.allclose(out, ref, atol=1e-4, rtol=1e-4)

    print("KERNEL_OK")
</pallas_src>

<mosaic_0001>
module attributes {stable_mosaic.version = 11 : i64} {
  func.func @_stats_kernel(%arg0: i32, %arg1: i32, %arg2: memref<2x32x16xf32, #tpu.memory_space<vmem>>, %arg3: memref<1x32x1xf32, #tpu.memory_space<vmem>>, %arg4: memref<1x32x1xf32, #tpu.memory_space<vmem>>, %arg5: memref<32x16xf32, #tpu.memory_space<vmem>>, %arg6: memref<32x16xf32, #tpu.memory_space<vmem>>) attributes {dimension_semantics = [#tpu.dimension_semantics<parallel>, #tpu.dimension_semantics<arbitrary>], iteration_bounds = array<i64: 1, 1>, scalar_prefetch = 0 : i64, scratch_operands = 2 : i64, tpu.core_type = #tpu.core_type<tc>, window_params = [{transform_indices = @transform_0, window_bounds = array<i64: 2, 32, 16>}, {transform_indices = @transform_1, window_bounds = array<i64: 1, 32, 1>}, {transform_indices = @transform_2, window_bounds = array<i64: 1, 32, 1>}]} {
    %c0_i32 = arith.constant 0 : i32
    %0 = arith.cmpi eq, %arg1, %c0_i32 : i32
    %1 = arith.extui %0 : i1 to i32
    %c0_i32_0 = arith.constant 0 : i32
    %2 = arith.cmpi ne, %1, %c0_i32_0 : i32
    scf.if %2 {
      %cst_14 = arith.constant 0.000000e+00 : f32
      %16 = vector.broadcast %cst_14 : f32 to vector<32x16xf32>
      %c0_15 = arith.constant 0 : index
      %c0_16 = arith.constant 0 : index
      %17 = vector.load %arg5[%c0_15, %c0_16] : memref<32x16xf32, #tpu.memory_space<vmem>>, vector<32x16xf32>
      tpu.vector_store %arg5[%c0_15, %c0_16], %16 {strides = array<i32>} : memref<32x16xf32, #tpu.memory_space<vmem>>, vector<32x16xf32>,
      %cst_17 = arith.constant 0.000000e+00 : f32
      %18 = vector.broadcast %cst_17 : f32 to vector<32x16xf32>
      %c0_18 = arith.constant 0 : index
      %c0_19 = arith.constant 0 : index
      %19 = vector.load %arg6[%c0_18, %c0_19] : memref<32x16xf32, #tpu.memory_space<vmem>>, vector<32x16xf32>
      tpu.vector_store %arg6[%c0_18, %c0_19], %18 {strides = array<i32>} : memref<32x16xf32, #tpu.memory_space<vmem>>, vector<32x16xf32>,
    } else {
    }
    %c0 = arith.constant 0 : index
    %c0_1 = arith.constant 0 : index
    %c0_2 = arith.constant 0 : index
    %3 = vector.load %arg2[%c0, %c0_1, %c0_2] : memref<2x32x16xf32, #tpu.memory_space<vmem>>, vector<2x32x16xf32>
    %c0_3 = arith.constant 0 : index
    %c0_4 = arith.constant 0 : index
    %4 = vector.load %arg5[%c0_3, %c0_4] : memref<32x16xf32, #tpu.memory_space<vmem>>, vector<32x16xf32>
    %cst = arith.constant dense<0.000000e+00> : vector<32x16xf32>
    %5 = vector.multi_reduction <add>, %3, %cst [0] : vector<2x32x16xf32> to vector<32x16xf32>
    %6 = arith.addf %4, %5 : vector<32x16xf32>
    %c0_5 = arith.constant 0 : index
    %c0_6 = arith.constant 0 : index
    %7 = vector.load %arg5[%c0_5, %c0_6] : memref<32x16xf32, #tpu.memory_space<vmem>>, vector<32x16xf32>
    tpu.vector_store %arg5[%c0_5, %c0_6], %6 {strides = array<i32>} : memref<32x16xf32, #tpu.memory_space<vmem>>, vector<32x16xf32>,
    %c0_7 = arith.constant 0 : index
    %c0_8 = arith.constant 0 : index
    %8 = vector.load %arg6[%c0_7, %c0_8] : memref<32x16xf32, #tpu.memory_space<vmem>>, vector<32x16xf32>
    %9 = arith.mulf %3, %3 : vector<2x32x16xf32>
    %cst_9 = arith.constant dense<0.000000e+00> : vector<32x16xf32>
    %10 = vector.multi_reduction <add>, %9, %cst_9 [0] : vector<2x32x16xf32> to vector<32x16xf32>
    %11 = arith.addf %8, %10 : vector<32x16xf32>
    %c0_10 = arith.constant 0 : index
    %c0_11 = arith.constant 0 : index
    %12 = vector.load %arg6[%c0_10, %c0_11] : memref<32x16xf32, #tpu.memory_space<vmem>>, vector<32x16xf32>
    tpu.vector_store %arg6[%c0_10, %c0_11], %11 {strides = array<i32>} : memref<32x16xf32, #tpu.memory_space<vmem>>, vector<32x16xf32>,
    %c0_i32_12 = arith.constant 0 : i32
    %13 = arith.cmpi eq, %arg1, %c0_i32_12 : i32
    %14 = arith.extui %13 : i1 to i32
    %c0_i32_13 = arith.constant 0 : i32
    %15 = arith.cmpi ne, %14, %c0_i32_13 : i32
    scf.if %15 {
      %c0_14 = arith.constant 0 : index
      %c0_15 = arith.constant 0 : index
      %16 = vector.load %arg5[%c0_14, %c0_15] : memref<32x16xf32, #tpu.memory_space<vmem>>, vector<32x16xf32>
      %cst_16 = arith.constant dense<0.000000e+00> : vector<32xf32>
      %17 = vector.multi_reduction <add>, %16, %cst_16 [1] : vector<32x16xf32> to vector<32xf32>
      %18 = vector.shape_cast %17 : vector<32xf32> to vector<32x1xf32>
      %19 = vector.shape_cast %18 : vector<32x1xf32> to vector<1x32x1xf32>
      %c0_17 = arith.constant 0 : index
      %c0_18 = arith.constant 0 : index
      %c0_19 = arith.constant 0 : index
      %20 = vector.load %arg3[%c0_17, %c0_18, %c0_19] : memref<1x32x1xf32, #tpu.memory_space<vmem>>, vector<1x32x1xf32>
      tpu.vector_store %arg3[%c0_17, %c0_18, %c0_19], %19 {strides = array<i32>} : memref<1x32x1xf32, #tpu.memory_space<vmem>>, vector<1x32x1xf32>,
      %c0_20 = arith.constant 0 : index
      %c0_21 = arith.constant 0 : index
      %21 = vector.load %arg6[%c0_20, %c0_21] : memref<32x16xf32, #tpu.memory_space<vmem>>, vector<32x16xf32>
      %cst_22 = arith.constant dense<0.000000e+00> : vector<32xf32>
      %22 = vector.multi_reduction <add>, %21, %cst_22 [1] : vector<32x16xf32> to vector<32xf32>
      %23 = vector.shape_cast %22 : vector<32xf32> to vector<32x1xf32>
      %24 = vector.shape_cast %23 : vector<32x1xf32> to vector<1x32x1xf32>
      %c0_23 = arith.constant 0 : index
      %c0_24 = arith.constant 0 : index
      %c0_25 = arith.constant 0 : index
      %25 = vector.load %arg4[%c0_23, %c0_24, %c0_25] : memref<1x32x1xf32, #tpu.memory_space<vmem>>, vector<1x32x1xf32>
      tpu.vector_store %arg4[%c0_23, %c0_24, %c0_25], %24 {strides = array<i32>} : memref<1x32x1xf32, #tpu.memory_space<vmem>>, vector<1x32x1xf32>,
    } else {
    }
    return
  }
  func.func @transform_0(%arg0: i32, %arg1: i32) -> (i32, i32, i32) {
    %c0_i32 = arith.constant 0 : i32
    %c0_i32_0 = arith.constant 0 : i32
    return %arg0, %c0_i32, %arg1 : i32, i32, i32
  }
  func.func @transform_1(%arg0: i32, %arg1: i32) -> (i32, i32, i32) {
    %c0_i32 = arith.constant 0 : i32
    %c0_i32_0 = arith.constant 0 : i32
    %c0_i32_1 = arith.constant 0 : i32
    return %arg0, %c0_i32, %c0_i32_0 : i32, i32, i32
  }
  func.func @transform_2(%arg0: i32, %arg1: i32) -> (i32, i32, i32) {
    %c0_i32 = arith.constant 0 : i32
    %c0_i32_0 = arith.constant 0 : i32
    %c0_i32_1 = arith.constant 0 : i32
    return %arg0, %c0_i32, %c0_i32_0 : i32, i32, i32
  }
}

</mosaic_0001>

<llo_original>
// kernel: tpu_custom_call.1
$region0: #{tpu_custom_call.1}
  #allocation0 [shape = 'u32[]', space=smem, size = 0x4, offset = 0x4, fixed_abs, tag = 'smem constant byte address 0x4 - core index']
  #allocation1 [shape = 'u32[144,128]{1,0:T(1,128)}', space=vmem, size = 0x12000, scoped, tag = 'internal scratch']
  #allocation2 [shape = 'f32[32,16]{1,0:T(8,128)}', space=vmem, size = 0x4000, scoped, tag = 'scratch operand']
  #allocation3 [shape = 'f32[32,16]{1,0:T(8,128)}', space=vmem, size = 0x4000, scoped, tag = 'scratch operand']
  %s0 = inlined_call_operand.vmem [shape: f32[2,32,16], index: 0, kind: input, shape index: {}]
  %s1 = inlined_call_operand.vmem [shape: f32[1,32,1], index: 1, kind: output, shape index: {0}]
  %s2 = inlined_call_operand.vmem [shape: f32[1,32,1], index: 2, kind: output, shape index: {1}]
  %3 = xla_tuple %s1, %s2
  %s4 = sld [smem:[#allocation0]]
  $region30: #{tpu_custom_call.1} parent=0
    _
  %s6 = ssub.s32 1, %s4
  %s7 = scalar_select 0, %s6, %s4
  // Predicated region
  $region2: #{tpu_custom_call.1} parent=0 // pred_check
    _
  $region3: #{tpu_custom_call.1} parent=0 // pred_check_branch
    %9 = sbr.rel (0) target = $region5
  $region4: #{tpu_custom_call.1} parent=0 // pred_region
    _
  $region5: #{tpu_custom_call.1} parent=0 // pred_fallthru
    _
  %p10 = scmp.eq.s32.totalorder 0, 0
  // Predicated region
  $region6: #{tpu_custom_call.1} parent=0 // pred_check
    %p11 = pneg %p10
  $region7: #{tpu_custom_call.1} parent=0 // pred_check_branch
    %13 = sbr.rel (%p11) target = $region9
  $region8: #{tpu_custom_call.1} parent=0 // pred_region
    %vm14 = vcmask 130048
    %15 = vst.msk [vmem:[#allocation2] sm:$0xff] %vm14, 0.0
    %16 = vst.msk [vmem:[#allocation2 + $0x8] sm:$0xff] %vm14, 0.0
    %17 = vst.msk [vmem:[#allocation2 + $0x10] sm:$0xff] %vm14, 0.0
    %18 = vst.msk [vmem:[#allocation2 + $0x18] sm:$0xff] %vm14, 0.0
    %19 = vst.msk [vmem:[#allocation3] sm:$0xff] %vm14, 0.0
    %20 = vst.msk [vmem:[#allocation3 + $0x8] sm:$0xff] %vm14, 0.0
    %21 = vst.msk [vmem:[#allocation3 + $0x10] sm:$0xff] %vm14, 0.0
    %22 = vst.msk [vmem:[#allocation3 + $0x18] sm:$0xff] %vm14, 0.0
  $region9: #{tpu_custom_call.1} parent=0 // pred_fallthru
    _
  %v23 = vld [vmem:[%s0] sm:$0xff]
  %v24 = vld [vmem:[%s0 + $0x8] sm:$0xff]
  %v25 = vld [vmem:[%s0 + $0x10] sm:$0xff]
  %v26 = vld [vmem:[%s0 + $0x18] sm:$0xff]
  %v27 = vld [vmem:[%s0 + $0x20] sm:$0xff]
  %v28 = vld [vmem:[%s0 + $0x28] sm:$0xff]
  %v29 = vld [vmem:[%s0 + $0x30] sm:$0xff]
  %v30 = vld [vmem:[%s0 + $0x38] sm:$0xff]
  %v31 = vld [vmem:[#allocation2] sm:$0xff]
  %v32 = vld [vmem:[#allocation2 + $0x8] sm:$0xff]
  %v33 = vld [vmem:[#allocation2 + $0x10] sm:$0xff]
  %v34 = vld [vmem:[#allocation2 + $0x18] sm:$0xff]
  %vm35 = vcmask 130048
  %v36 = vsel %vm35, %v23, 0.0
  %v37 = vsel %vm35, %v27, 0.0
  %v38 = vadd.f32 %v36, %v37
  %v39 = vsel %vm35, %v24, 0.0
  %v40 = vsel %vm35, %v28, 0.0
  %v41 = vadd.f32 %v39, %v40
  %v42 = vsel %vm35, %v25, 0.0
  %v43 = vsel %vm35, %v29, 0.0
  %v44 = vadd.f32 %v42, %v43
  %v45 = vsel %vm35, %v26, 0.0
  %v46 = vsel %vm35, %v30, 0.0
  %v47 = vadd.f32 %v45, %v46
  %v48 = vadd.f32 %v31, %v38
  %v49 = vadd.f32 %v32, %v41
  %v50 = vadd.f32 %v33, %v44
  %v51 = vadd.f32 %v34, %v47
  %52 = vst.msk [vmem:[#allocation2] sm:$0xff] %vm35, %v48
  %53 = vst.msk [vmem:[#allocation2 + $0x8] sm:$0xff] %vm35, %v49
  %54 = vst.msk [vmem:[#allocation2 + $0x10] sm:$0xff] %vm35, %v50
  %55 = vst.msk [vmem:[#allocation2 + $0x18] sm:$0xff] %vm35, %v51
  %v56 = vld [vmem:[#allocation3] sm:$0xff]
  %v57 = vld [vmem:[#allocation3 + $0x8] sm:$0xff]
  %v58 = vld [vmem:[#allocation3 + $0x10] sm:$0xff]
  %v59 = vld [vmem:[#allocation3 + $0x18] sm:$0xff]
  %v60 = vmul.f32 %v23, %v23
  %v61 = vmul.f32 %v24, %v24
  %v62 = vmul.f32 %v25, %v25
  %v63 = vmul.f32 %v26, %v26
  %v64 = vmul.f32 %v27, %v27
  %v65 = vmul.f32 %v28, %v28
  %v66 = vmul.f32 %v29, %v29
  %v67 = vmul.f32 %v30, %v30
  %v68 = vsel %vm35, %v60, 0.0
  %v69 = vsel %vm35, %v64, 0.0
  %v70 = vadd.f32 %v68, %v69
  %v71 = vsel %vm35, %v61, 0.0
  %v72 = vsel %vm35, %v65, 0.0
  %v73 = vadd.f32 %v71, %v72
  %v74 = vsel %vm35, %v62, 0.0
  %v75 = vsel %vm35, %v66, 0.0
  %v76 = vadd.f32 %v74, %v75
  %v77 = vsel %vm35, %v63, 0.0
  %v78 = vsel %vm35, %v67, 0.0
  %v79 = vadd.f32 %v77, %v78
  %v80 = vadd.f32 %v56, %v70
  %v81 = vadd.f32 %v57, %v73
  %v82 = vadd.f32 %v58, %v76
  %v83 = vadd.f32 %v59, %v79
  %84 = vst.msk [vmem:[#allocation3] sm:$0xff] %vm35, %v80
  %85 = vst.msk [vmem:[#allocation3 + $0x8] sm:$0xff] %vm35, %v81
  %86 = vst.msk [vmem:[#allocation3 + $0x10] sm:$0xff] %vm35, %v82
  %87 = vst.msk [vmem:[#allocation3 + $0x18] sm:$0xff] %vm35, %v83
  // Predicated region
  $region10: #{tpu_custom_call.1} parent=0 // pred_check
    %p88 = pneg %p10
  $region11: #{tpu_custom_call.1} parent=0 // pred_check_branch
    %90 = sbr.rel (%p88) target = $region13
  $region12: #{tpu_custom_call.1} parent=0 // pred_region
    %v91 = vld [vmem:[#allocation2] sm:$0xff]
    %v92 = vld [vmem:[#allocation2 + $0x8] sm:$0xff]
    %v93 = vld [vmem:[#allocation2 + $0x10] sm:$0xff]
    %v94 = vld [vmem:[#allocation2 + $0x18] sm:$0xff]
    %v95 = vsel %vm35, %v91, 0.0
    %96 = vadd.xlane.f32.xlu0 %v95
    %v97 = vpop.xlane.xlu0 %96
    %v98 = vsel %vm35, %v92, 0.0
    %99 = vadd.xlane.f32.xlu0 %v98
    %v100 = vpop.xlane.xlu0 %99
    %v101 = vsel %vm35, %v93, 0.0
    %102 = vadd.xlane.f32.xlu0 %v101
    %v103 = vpop.xlane.xlu0 %102
    %v104 = vsel %vm35, %v94, 0.0
    %105 = vadd.xlane.f32.xlu0 %v104
    %v106 = vpop.xlane.xlu0 %105
    %vm107 = vcmask 7168
    %108 = vst.msk [vmem:[%s1] sm:$0xff] %vm107, %v97
    %109 = vst.msk [vmem:[%s1 + $0x8] sm:$0xff] %vm107, %v100
    %110 = vst.msk [vmem:[%s1 + $0x10] sm:$0xff] %vm107, %v103
    %111 = vst.msk [vmem:[%s1 + $0x18] sm:$0xff] %vm107, %v106
    %v112 = vld [vmem:[#allocation3] sm:$0xff]
    %v113 = vld [vmem:[#allocation3 + $0x8] sm:$0xff]
    %v114 = vld [vmem:[#allocation3 + $0x10] sm:$0xff]
    %v115 = vld [vmem:[#allocation3 + $0x18] sm:$0xff]
    %v116 = vsel %vm35, %v112, 0.0
    %117 = vadd.xlane.f32.xlu0 %v116
    %v118 = vpop.xlane.xlu0 %117
    %v119 = vsel %vm35, %v113, 0.0
    %120 = vadd.xlane.f32.xlu0 %v119
    %v121 = vpop.xlane.xlu0 %120
    %v122 = vsel %vm35, %v114, 0.0
    %123 = vadd.xlane.f32.xlu0 %v122
    %v124 = vpop.xlane.xlu0 %123
    %v125 = vsel %vm35, %v115, 0.0
    %126 = vadd.xlane.f32.xlu0 %v125
    %v127 = vpop.xlane.xlu0 %126
    %128 = vst.msk [vmem:[%s2] sm:$0xff] %vm107, %v118
    %129 = vst.msk [vmem:[%s2 + $0x8] sm:$0xff] %vm107, %v121
    %130 = vst.msk [vmem:[%s2 + $0x10] sm:$0xff] %vm107, %v124
    %131 = vst.msk [vmem:[%s2 + $0x18] sm:$0xff] %vm107, %v127
  $region13: #{tpu_custom_call.1} parent=0 // pred_fallthru
    _
  // Predicated region
  $region14: #{tpu_custom_call.1} parent=0 // pred_check
    _
  $region15: #{tpu_custom_call.1} parent=0 // pred_check_branch
    %133 = sbr.rel (0) target = $region17
  $region16: #{tpu_custom_call.1} parent=0 // pred_region
    _
  $region17: #{tpu_custom_call.1} parent=0 // pred_fallthru
    _
  // Predicated region
  $region18: #{tpu_custom_call.1} parent=0 // pred_check
    _
  $region19: #{tpu_custom_call.1} parent=0 // pred_check_branch
    %135 = sbr.rel (0) target = $region21
  $region20: #{tpu_custom_call.1} parent=0 // pred_region
    _
  $region21: #{tpu_custom_call.1} parent=0 // pred_fallthru
    _
  // Predicated region
  $region22: #{tpu_custom_call.1} parent=0 // pred_check
    _
  $region23: #{tpu_custom_call.1} parent=0 // pred_check_branch
    %137 = sbr.rel (0) target = $region25
  $region24: #{tpu_custom_call.1} parent=0 // pred_region
    _
  $region25: #{tpu_custom_call.1} parent=0 // pred_fallthru
    _
  // Predicated region
  $region26: #{tpu_custom_call.1} parent=0 // pred_check
    _
  $region27: #{tpu_custom_call.1} parent=0 // pred_check_branch
    %139 = sbr.rel (0) target = $region29
  $region28: #{tpu_custom_call.1} parent=0 // pred_region
    _
  $region29: #{tpu_custom_call.1} parent=0 // pred_fallthru
    _

</llo_original>
